<compile_context>
chip_gen: v6e
topology: v6e:2x2x1
jax: 0.10.0
libtpu: 0.0.40
codegen_flags: <defaults>
</compile_context>

<pallas_src>
import functools

import jax
import jax.numpy as jnp
from jax.experimental import pallas as pl
from jax.experimental.pallas import tpu as pltpu


def _round_up(x, m):
    return ((x + m - 1) // m) * m


# --------------------------------------------------------------------------
# Pallas kernel: tiled, fused multi-layer linear   y[l] = x @ W[l] + b[l]
# --------------------------------------------------------------------------
def _fused_linear_kernel(x_ref, w_ref, b_ref, o_ref, acc_ref):
    # Grid = (layer, m, n, k); k (the reduction) is the innermost axis.
    # Blocks seen here: x (tm, tk) bf16, w (tk, tn) bf16, b (8, tn) f32,
    # o (tm, tn) out_dtype, acc (tm, tn) f32 scratch.
    k = pl.program_id(3)

    @pl.when(k == 0)
    def _():
        acc_ref[...] = jnp.zeros_like(acc_ref)

    # MXU matmul, f32 accumulation.
    acc_ref[...] += jnp.dot(x_ref[...], w_ref[...],
                            preferred_element_type=jnp.float32)

    @pl.when(k == pl.num_programs(3) - 1)
    def _():
        # Bias rows are replicated across the 8 sublanes; a single-row slice
        # gives a clean (1, tn) sublane-broadcast add on the VPU in f32.
        bias = b_ref[0:1, :]
        o_ref[...] = (acc_ref[...] + bias).astype(o_ref.dtype)


@functools.partial(jax.jit, static_argnames=("out_dtype",))
def fused_linear(x, w_stack, b_stack, *, out_dtype=jnp.float32):
    """y[l] = x @ w_stack[l] + b_stack[l]   (bf16 MXU inputs, f32 accumulate).

    x       : [B, Din]          any float dtype (cast to bf16 for the MXU)
    w_stack : [L, Din, Dout]
    b_stack : [L, 8, Dout]      bias replicated across the 8 sublanes (f32)
    returns : [L, B, Dout]      in out_dtype
    """
    B, Din = x.shape
    L, _, Dout = w_stack.shape

    # Tile sizes: re-derived per problem shape, sized against v7x's 64 MiB VMEM
    # (double-buffered bf16 inputs + f32 acc stay well under budget at caps).
    tm = min(128, _round_up(B, 8))
    tn = min(256, _round_up(Dout, 128))   # lane-dense (>=128); 256 fills MXU
    tk = min(512, _round_up(Din, 128))

    Mp = _round_up(B, tm)
    Kp = _round_up(Din, tk)
    Np = _round_up(Dout, tn)

    # Zero-pad (only when needed): padded-K contributes nothing; padded-N keeps
    # stores lane-dense (unmasked vst).
    x_bf16 = x.astype(jnp.bfloat16)
    if (Mp, Kp) != (B, Din):
        xp = jnp.zeros((Mp, Kp), jnp.bfloat16).at[:B, :Din].set(x_bf16)
    else:
        xp = x_bf16

    w_bf16 = w_stack.astype(jnp.bfloat16)
    if (Kp, Np) != (Din, Dout):
        wp = jnp.zeros((L, Kp, Np), jnp.bfloat16).at[:, :Din, :Dout].set(w_bf16)
    else:
        wp = w_bf16

    b_f32 = b_stack.astype(jnp.float32)
    if Np != Dout:
        bp = jnp.zeros((L, 8, Np), jnp.float32).at[:, :, :Dout].set(b_f32)
    else:
        bp = b_f32

    grid = (L, Mp // tm, Np // tn, Kp // tk)

    flops = 2 * L * Mp * Kp * Np + L * Mp * Np
    bytes_accessed = (xp.size * 2 + wp.size * 2 + bp.size * 4
                      + L * Mp * Np * jnp.dtype(out_dtype).itemsize)

    yp = pl.pallas_call(
        _fused_linear_kernel,
        out_shape=jax.ShapeDtypeStruct((L, Mp, Np), out_dtype),
        grid_spec=pltpu.PrefetchScalarGridSpec(
            num_scalar_prefetch=0,
            grid=grid,
            in_specs=[
                # x is shared across layers.
                pl.BlockSpec((tm, tk), lambda l, i, j, k: (i, k)),
                # per-layer weight tile (layer dim squeezed).
                pl.BlockSpec((None, tk, tn), lambda l, i, j, k: (l, k, j)),
                # per-layer sublane-dense bias tile.
                pl.BlockSpec((None, 8, tn), lambda l, i, j, k: (l, 0, j)),
            ],
            out_specs=pl.BlockSpec((None, tm, tn),
                                   lambda l, i, j, k: (l, i, j)),
            scratch_shapes=[pltpu.VMEM((tm, tn), jnp.float32)],
        ),
        compiler_params=pltpu.CompilerParams(
            dimension_semantics=("parallel", "parallel", "parallel",
                                 "arbitrary"),
        ),
        cost_estimate=pl.CostEstimate(flops=flops,
                                      transcendentals=0,
                                      bytes_accessed=bytes_accessed),
    )(xp, wp, bp)

    # Restore the logical shape (drop lane/sublane padding).
    return yp[:, :B, :Dout]


# --------------------------------------------------------------------------
# A tiny "registered model": JAX analog of the nn.Linear sub-modules that
# Trajectron++ stores inside the registrar.
# --------------------------------------------------------------------------
class PallasLinear:
    def __init__(self, key, in_features, out_features):
        kw, kb = jax.random.split(key)
        self.in_features = in_features
        self.out_features = out_features
        # Weight stored as [Din, Dout] (PyTorch weight^T), bf16 for the MXU.
        self.w = (jax.random.normal(kw, (in_features, out_features),
                                    jnp.float32)
                  * (1.0 / jnp.sqrt(in_features))).astype(jnp.bfloat16)
        # Bias kept in f32 and materialized as a sublane-dense (8, Dout) tile.
        b = jax.random.normal(kb, (1, out_features), jnp.float32) * 0.01
        self.b = jnp.broadcast_to(b, (8, out_features)).astype(jnp.float32)
        # TODO(synk): a quantized path would use int8 weights on v5e/v6e but
        # fp8 on v7x (no int MXU path there); not implemented here.

    def __call__(self, x):
        y = fused_linear(x, self.w[None], self.b[None])
        return y[0]


def fused_linear_layers(layers, x):
    """Run several registered PallasLinear layers (same Din/Dout) in ONE
    pallas_call over a leading 'layer' grid axis (amortizes launch/DMA)."""
    w_stack = jnp.stack([m.w for m in layers])
    b_stack = jnp.stack([m.b for m in layers])
    return fused_linear(x, w_stack, b_stack)


# --------------------------------------------------------------------------
# ModelRegistrar: faithful port of the PyTorch container semantics.
# --------------------------------------------------------------------------
class ModelRegistrar:
    def __init__(self, model_dir, device):
        self.model_dict = {}
        self.model_dir = model_dir
        self.device = device

    def forward(self):
        # Exact semantics of the PyTorch module: no compute lives here.
        raise NotImplementedError(
            'Although ModelRegistrar is a nn.Module, it is only to store '
            'parameters.')

    def __call__(self):
        return self.forward()

    def get_model(self, name, model_if_absent=None):
        if name in self.model_dict:
            return self.model_dict[name]
        elif model_if_absent is not None:
            # device placement is implicit in JAX (arrays already on default TPU)
            self.model_dict[name] = model_if_absent
            return self.model_dict[name]
        else:
            raise ValueError(f'{name} was never initialized in this Registrar!')

    def get_name_match(self, name):
        return [self.model_dict[k] for k in self.model_dict if name in k]

    def get_all_but_name_match(self, name):
        return [self.model_dict[k] for k in self.model_dict if name not in k]

    def run_name_match_fused(self, name, x):
        """All name-matching registered Linear layers in a single pallas_call."""
        return fused_linear_layers(self.get_name_match(name), x)

    def print_model_names(self):
        print(list(self.model_dict.keys()))

    # TODO(synk): save_models / load_models serialize to .pt via torch.save;
    # no Pallas/JAX equivalent is implemented here (no file I/O by design).


# --------------------------------------------------------------------------
if __name__ == "__main__":
    key = jax.random.PRNGKey(0)
    k_x, k_m1, k_m2 = jax.random.split(key, 3)

    batch, din, dout = 8, 32, 64
    x = jax.random.normal(k_x, (batch, din), jnp.float32)

    registrar = ModelRegistrar(model_dir="/unused", device="tpu")

    # Registrar forward must raise, exactly like the PyTorch module.
    try:
        registrar()
        raise AssertionError("ModelRegistrar.forward should have raised")
    except NotImplementedError:
        pass

    # Register sub-modules through get_model (the actual usage pattern).
    lin_a = registrar.get_model(
        "node/edge_encoder", PallasLinear(k_m1, din, dout))
    lin_b = registrar.get_model(
        "node/state_encoder", PallasLinear(k_m2, din, dout))
    assert registrar.get_model("node/edge_encoder") is lin_a
    assert len(registrar.get_name_match("encoder")) == 2
    assert len(registrar.get_all_but_name_match("edge")) == 1

    # ---- one registered layer through the Pallas kernel ----
    y_a = jax.block_until_ready(lin_a(x))

    # ---- both registered encoders fused into a single pallas_call ----
    y_fused = jax.block_until_ready(
        registrar.run_name_match_fused("encoder", x))

    # Reference (bf16 inputs, f32 accumulation — matches the kernel numerics).
    def ref(m):
        return (x.astype(jnp.bfloat16).astype(jnp.float32)
                @ m.w.astype(jnp.float32)
                + m.b[0:1].astype(jnp.float32))

    assert y_a.shape == (batch, dout)
    assert y_fused.shape == (2, batch, dout)
    assert jnp.allclose(y_a, ref(lin_a), atol=1e-2, rtol=1e-2)
    assert jnp.allclose(y_fused[0], ref(lin_a), atol=1e-2, rtol=1e-2)
    assert jnp.allclose(y_fused[1], ref(lin_b), atol=1e-2, rtol=1e-2)

    print("KERNEL_OK")
</pallas_src>

<mosaic_0001>
module attributes {stable_mosaic.version = 11 : i64} {
  func.func @_fused_linear_kernel(%arg0: i32, %arg1: i32, %arg2: i32, %arg3: i32, %arg4: memref<8x128xbf16, #tpu.memory_space<vmem>>, %arg5: memref<1x128x128xbf16, #tpu.memory_space<vmem>>, %arg6: memref<1x8x128xf32, #tpu.memory_space<vmem>>, %arg7: memref<1x8x128xf32, #tpu.memory_space<vmem>>, %arg8: memref<8x128xf32, #tpu.memory_space<vmem>>) attributes {dimension_semantics = [#tpu.dimension_semantics<parallel>, #tpu.dimension_semantics<parallel>, #tpu.dimension_semantics<parallel>, #tpu.dimension_semantics<arbitrary>], iteration_bounds = array<i64: 1, 1, 1, 1>, scalar_prefetch = 0 : i64, scratch_operands = 1 : i64, tpu.core_type = #tpu.core_type<tc>, window_params = [{transform_indices = @transform_0, window_bounds = array<i64: 8, 128>}, {transform_indices = @transform_1, window_bounds = array<i64: 1, 128, 128>}, {transform_indices = @transform_2, window_bounds = array<i64: 1, 8, 128>}, {transform_indices = @transform_3, window_bounds = array<i64: 1, 8, 128>}]} {
    %c0_i32 = arith.constant 0 : i32
    %0 = arith.cmpi eq, %arg3, %c0_i32 : i32
    %1 = arith.extui %0 : i1 to i32
    %c0_i32_0 = arith.constant 0 : i32
    %2 = arith.cmpi ne, %1, %c0_i32_0 : i32
    scf.if %2 {
      %cst_11 = arith.constant 0.000000e+00 : f32
      %13 = vector.broadcast %cst_11 : f32 to vector<8x128xf32>
      %c0_12 = arith.constant 0 : index
      %c0_13 = arith.constant 0 : index
      %14 = vector.load %arg8[%c0_12, %c0_13] : memref<8x128xf32, #tpu.memory_space<vmem>>, vector<8x128xf32>
      tpu.vector_store %arg8[%c0_12, %c0_13], %13 {strides = array<i32>} : memref<8x128xf32, #tpu.memory_space<vmem>>, vector<8x128xf32>,
    } else {
    }
    %c0 = arith.constant 0 : index
    %c0_1 = arith.constant 0 : index
    %3 = vector.load %arg8[%c0, %c0_1] : memref<8x128xf32, #tpu.memory_space<vmem>>, vector<8x128xf32>
    %c0_2 = arith.constant 0 : index
    %c0_3 = arith.constant 0 : index
    %4 = vector.load %arg4[%c0_2, %c0_3] : memref<8x128xbf16, #tpu.memory_space<vmem>>, vector<8x128xbf16>
    %c0_4 = arith.constant 0 : index
    %c0_5 = arith.constant 0 : index
    %c0_6 = arith.constant 0 : index
    %5 = vector.load %arg5[%c0_4, %c0_5, %c0_6] : memref<1x128x128xbf16, #tpu.memory_space<vmem>>, vector<1x128x128xbf16>
    %6 = vector.shape_cast %5 : vector<1x128x128xbf16> to vector<128x128xbf16>
    %cst = arith.constant dense<0.000000e+00> : vector<8x128xf32>
    %7 = tpu.matmul %4, %6, %cst {dimension_numbers = #tpu.dot_dimension_numbers<[1], [0], [0], [1], [0, 0, 1, 1], [], []>} : vector<8x128xbf16>, vector<128x128xbf16>, vector<8x128xf32> -> vector<8x128xf32>
    %8 = arith.addf %3, %7 : vector<8x128xf32>
    %c0_7 = arith.constant 0 : index
    %c0_8 = arith.constant 0 : index
    %9 = vector.load %arg8[%c0_7, %c0_8] : memref<8x128xf32, #tpu.memory_space<vmem>>, vector<8x128xf32>
    tpu.vector_store %arg8[%c0_7, %c0_8], %8 {strides = array<i32>} : memref<8x128xf32, #tpu.memory_space<vmem>>, vector<8x128xf32>,
    %c0_i32_9 = arith.constant 0 : i32
    %10 = arith.cmpi eq, %arg3, %c0_i32_9 : i32
    %11 = arith.extui %10 : i1 to i32
    %c0_i32_10 = arith.constant 0 : i32
    %12 = arith.cmpi ne, %11, %c0_i32_10 : i32
    scf.if %12 {
      %c0_11 = arith.constant 0 : index
      %c0_12 = arith.constant 0 : index
      %c0_13 = arith.constant 0 : index
      %13 = vector.load %arg6[%c0_11, %c0_12, %c0_13] : memref<1x8x128xf32, #tpu.memory_space<vmem>>, vector<1x1x128xf32>
      %14 = vector.shape_cast %13 : vector<1x1x128xf32> to vector<1x128xf32>
      %c0_14 = arith.constant 0 : index
      %c0_15 = arith.constant 0 : index
      %15 = vector.load %arg8[%c0_14, %c0_15] : memref<8x128xf32, #tpu.memory_space<vmem>>, vector<8x128xf32>
      %16 = vector.broadcast %14 : vector<1x128xf32> to vector<8x128xf32>
      %17 = arith.addf %15, %16 : vector<8x128xf32>
      %c0_16 = arith.constant 0 : index
      %c0_17 = arith.constant 0 : index
      %c0_18 = arith.constant 0 : index
      %18 = vector.load %arg7[%c0_16, %c0_17, %c0_18] : memref<1x8x128xf32, #tpu.memory_space<vmem>>, vector<1x8x128xf32>
      %19 = vector.shape_cast %18 : vector<1x8x128xf32> to vector<8x128xf32>
      %20 = vector.shape_cast %17 : vector<8x128xf32> to vector<1x8x128xf32>
      tpu.vector_store %arg7[%c0_16, %c0_17, %c0_18], %20 {strides = array<i32>} : memref<1x8x128xf32, #tpu.memory_space<vmem>>, vector<1x8x128xf32>,
    } else {
    }
    return
  }
  func.func @transform_0(%arg0: i32, %arg1: i32, %arg2: i32, %arg3: i32) -> (i32, i32) {
    %c0_i32 = arith.constant 0 : i32
    return %arg1, %arg3 : i32, i32
  }
  func.func @transform_1(%arg0: i32, %arg1: i32, %arg2: i32, %arg3: i32) -> (i32, i32, i32) {
    %c0_i32 = arith.constant 0 : i32
    return %arg0, %arg3, %arg2 : i32, i32, i32
  }
  func.func @transform_2(%arg0: i32, %arg1: i32, %arg2: i32, %arg3: i32) -> (i32, i32, i32) {
    %c0_i32 = arith.constant 0 : i32
    %c0_i32_0 = arith.constant 0 : i32
    return %arg0, %c0_i32, %arg2 : i32, i32, i32
  }
  func.func @transform_3(%arg0: i32, %arg1: i32, %arg2: i32, %arg3: i32) -> (i32, i32, i32) {
    %c0_i32 = arith.constant 0 : i32
    return %arg0, %arg1, %arg2 : i32, i32, i32
  }
}

</mosaic_0001>

<llo_original>
// kernel: fused_linear.1
$region0: #{fused_linear.1}
  #allocation0 [shape = 'u32[]', space=smem, size = 0x4, offset = 0x4, fixed_abs, tag = 'smem constant byte address 0x4 - core index']
  #allocation1 [shape = 'u32[144,128]{1,0:T(1,128)}', space=vmem, size = 0x12000, scoped, tag = 'internal scratch']
  #allocation2 [shape = 'f32[8,128]{1,0:T(8,128)}', space=vmem, size = 0x1000, scoped, tag = 'scratch operand']
  %s0 = inlined_call_operand.vmem [shape: bf16[8,128], index: 0, kind: input, shape index: {}]
  %s1 = inlined_call_operand.vmem [shape: bf16[1,128,128], index: 1, kind: input, shape index: {}]
  %s2 = inlined_call_operand.vmem [shape: f32[1,8,128], index: 2, kind: input, shape index: {}]
  %s3 = inlined_call_operand.hbm [shape: f32[1,8,128], index: 3, kind: output, shape index: {}]
  %s4 = sld [smem:[#allocation0]]
  $region30: #{fused_linear.1} parent=0
    _
  %s6 = ssub.s32 1, %s4
  %s7 = scalar_select 0, %s6, %s4
  $region1: #{fused_linear.1} parent=0
    #allocation3 [shape = 'u8[4096]{0}', space=vmem, size = 0x1000, scoped, tag = 'output window, operand 0, single buffered']
    #allocation4 [shape = 's32[1]{0}', space=sflag, size = 0x4, scoped, tag = 'scoped memory for fused_linear.1']
    %8 = vsyncpa [#allocation4], 0
    // Predicated region
    $region2: #{fused_linear.1} parent=1 // pred_check
      _
    $region3: #{fused_linear.1} parent=1 // pred_check_branch
      %10 = sbr.rel (0) target = $region5
    $region4: #{fused_linear.1} parent=1 // pred_region
      _
    $region5: #{fused_linear.1} parent=1 // pred_fallthru
      _
    // Predicated region
    $region6: #{fused_linear.1} parent=1 // pred_check
      _
    $region7: #{fused_linear.1} parent=1 // pred_check_branch
      %12 = sbr.rel (0) target = $region9
    $region8: #{fused_linear.1} parent=1 // pred_region
      _
    $region9: #{fused_linear.1} parent=1 // pred_fallthru
      _
    // Predicated region
    $region10: #{fused_linear.1} parent=1 // pred_check
      _
    $region11: #{fused_linear.1} parent=1 // pred_check_branch
      %14 = sbr.rel (0) target = $region13
    $region12: #{fused_linear.1} parent=1 // pred_region
      _
    $region13: #{fused_linear.1} parent=1 // pred_fallthru
      _
    %p16 = scmp.eq.s32.totalorder 0, 0
    // Predicated region
    $region14: #{fused_linear.1} parent=1 // pred_check
      %p17 = pneg %p16
    $region15: #{fused_linear.1} parent=1 // pred_check_branch
      %19 = sbr.rel (%p17) target = $region17
    $region16: #{fused_linear.1} parent=1 // pred_region
      %20 = vst [vmem:[#allocation2] sm:$0xff] 0.0
    $region17: #{fused_linear.1} parent=1 // pred_fallthru
      _
    %v21 = vld [vmem:[#allocation2] sm:$0xff]
    %v22 = vld [vmem:[%s0] sm:$0xf]
    %v23 = vld [vmem:[%s1] sm:$0xf]
    %v24 = vld [vmem:[%s1 + $0x4] sm:$0xf]
    %v25 = vld [vmem:[%s1 + $0x8] sm:$0xf]
    %v26 = vld [vmem:[%s1 + $0xc] sm:$0xf]
    %v27 = vld [vmem:[%s1 + $0x10] sm:$0xf]
    %v28 = vld [vmem:[%s1 + $0x14] sm:$0xf]
    %v29 = vld [vmem:[%s1 + $0x18] sm:$0xf]
    %v30 = vld [vmem:[%s1 + $0x1c] sm:$0xf]
    %v31 = vld [vmem:[%s1 + $0x20] sm:$0xf]
    %v32 = vld [vmem:[%s1 + $0x24] sm:$0xf]
    %v33 = vld [vmem:[%s1 + $0x28] sm:$0xf]
    %v34 = vld [vmem:[%s1 + $0x2c] sm:$0xf]
    %v35 = vld [vmem:[%s1 + $0x30] sm:$0xf]
    %v36 = vld [vmem:[%s1 + $0x34] sm:$0xf]
    %v37 = vld [vmem:[%s1 + $0x38] sm:$0xf]
    %v38 = vld [vmem:[%s1 + $0x3c] sm:$0xf]
    %v55 = vunpack.c.l.b16 %v23
    %v56 = vunpack.c.l.b16 %v24
    %v57 = vunpack.c.l.b16 %v25
    %v58 = vunpack.c.l.b16 %v26
    %v59 = vunpack.c.l.b16 %v27
    %v60 = vunpack.c.l.b16 %v28
    %v61 = vunpack.c.l.b16 %v29
    %v62 = vunpack.c.l.b16 %v30
    %v63 = vunpack.c.l.b16 %v31
    %v64 = vunpack.c.l.b16 %v32
    %v65 = vunpack.c.l.b16 %v33
    %v66 = vunpack.c.l.b16 %v34
    %v67 = vunpack.c.l.b16 %v35
    %v68 = vunpack.c.l.b16 %v36
    %v69 = vunpack.c.l.b16 %v37
    %v70 = vunpack.c.l.b16 %v38
    %v71 = vpack.c.b16 %v56, %v55
    %v72 = vpack.c.b16 %v58, %v57
    %v73 = vpack.c.b16 %v60, %v59
    %v74 = vpack.c.b16 %v62, %v61
    %v75 = vpack.c.b16 %v64, %v63
    %v76 = vpack.c.b16 %v66, %v65
    %v77 = vpack.c.b16 %v68, %v67
    %v78 = vpack.c.b16 %v70, %v69
    %87 = vmatprep.subr.bf16.mxu0 0
    %88 = vmatpush1.bf16.msra.mxu0 %v78
    %89 = vmatprep.subr.bf16.mxu0 0
    %90 = vmatpush1.bf16.msra.mxu0 %v77
    %91 = vmatprep.subr.bf16.mxu0 0
    %92 = vmatpush1.bf16.msra.mxu0 %v76
    %93 = vmatprep.subr.bf16.mxu0 0
    %94 = vmatpush1.bf16.msra.mxu0 %v75
    %95 = vmatprep.subr.bf16.mxu0 0
    %96 = vmatpush1.bf16.msra.mxu0 %v74
    %97 = vmatprep.subr.bf16.mxu0 0
    %98 = vmatpush1.bf16.msra.mxu0 %v73
    %99 = vmatprep.subr.bf16.mxu0 0
    %100 = vmatpush1.bf16.msra.mxu0 %v72
    %101 = vmatprep.subr.bf16.mxu0 0
    %102 = vmatpush1.bf16.msra.mxu0 %v71
    %103 = vmatprep.subr.bf16.mxu0 0
    %104 = vmatpush2.bf16.msra.mxu0 0
    %105 = vmatprep.subr.bf16.mxu0 0
    %106 = vmatpush2.bf16.msra.mxu0 0
    %107 = vmatprep.subr.bf16.mxu0 0
    %108 = vmatpush2.bf16.msra.mxu0 0
    %109 = vmatprep.subr.bf16.mxu0 0
    %110 = vmatpush2.bf16.msra.mxu0 0
    %111 = vmatprep.subr.bf16.mxu0 0
    %112 = vmatpush2.bf16.msra.mxu0 0
    %113 = vmatprep.subr.bf16.mxu0 0
    %114 = vmatpush2.bf16.msra.mxu0 0
    %115 = vmatprep.subr.bf16.mxu0 0
    %116 = vmatpush2.bf16.msra.mxu0 0
    %117 = vmatprep.subr.bf16.mxu0 0
    %118 = vmatpush2.bf16.msra.mxu0 0
    %119 = vmatprep.mubr.bf16.mxu0 0
    %120 = vmatmul.mubr.bf16.gmra.mxu0 %v22
    %v121 = vpop.f32.mrf.mxu0
    %v122 = vadd.f32 0.0, %v121
    %v123 = vpop.f32.mrf.mxu0
    %v124 = vpop.f32.mrf.mxu0
    %v125 = vpop.f32.mrf.mxu0
    %126 = vdwg.mxu0
    %v127 = vadd.f32 %v21, %v122
    %128 = vst [vmem:[#allocation2] sm:$0xff] %v127
    // Predicated region
    $region18: #{fused_linear.1} parent=1 // pred_check
      %p129 = pneg %p16
    $region19: #{fused_linear.1} parent=1 // pred_check_branch
      %131 = sbr.rel (%p129) target = $region21
    $region20: #{fused_linear.1} parent=1 // pred_region
      %v132 = vld [vmem:[%s2] sm:$0x1]
      %v133 = vld [vmem:[#allocation2] sm:$0xff]
      %v134 = vlaneseq
      %v135 = vshrl.u32 %v134, 7
      %v136 = vsub.s32 0, %v135
      %v137 = vrot.slane %v132, %v136
      %v138 = vadd.f32 %v133, %v137
      %139 = vst [vmem:[#allocation3] sm:$0xff] %v138
    $region21: #{fused_linear.1} parent=1 // pred_fallthru
      _
    // Predicated region
    $region22: #{fused_linear.1} parent=1 // pred_check
      _
    $region23: #{fused_linear.1} parent=1 // pred_check_branch
      %141 = sbr.rel (0) target = $region25
    $region24: #{fused_linear.1} parent=1 // pred_region
      %s143 = ssub.s32 128, 128
      %144 = vsyncadd [#allocation4], %s143
      %s146 = sshll.u32 [#allocation3], 4
      %s147 = int_to_ptr.vmem [resolvable:$true] %s146
      %149 = dma.vmem_to_hbm [thread:$0]  %s147, 128, %s3, [#allocation4]
    $region25: #{fused_linear.1} parent=1 // pred_fallthru
      _
    // Predicated region
    $region26: #{fused_linear.1} parent=1 // pred_check
      _
    $region27: #{fused_linear.1} parent=1 // pred_check_branch
      %151 = sbr.rel (0) target = $region29
    $region28: #{fused_linear.1} parent=1 // pred_region
      %152 = dma.done [#allocation4], 128
    $region29: #{fused_linear.1} parent=1 // pred_fallthru
      _
    %153 = vsyncpa [#allocation4], 1

</llo_original>
